<compile_context>
chip_gen: v5e
topology: v5e:2x2
jax: 0.10.0
libtpu: 0.0.40
codegen_flags: <defaults>
</compile_context>

<pallas_src>
import jax
import jax.numpy as jnp
from jax import lax
from jax.experimental import pallas as pl
from jax.experimental.pallas import tpu as pltpu

LANES = 128


def _cdiv(a, b):
    return -(-a // b)


def _round_up(a, b):
    return _cdiv(a, b) * b


def _device_kind():
    try:
        return jax.devices()[0].device_kind.lower()
    except Exception:
        return ""


def _num_tensorcores(kind):
    # Dual-TensorCore / megacore parts; default (v5e/v6e/unknown) is 1.
    return 2 if any(s in kind for s in ("v4", "v5p", "v7", "tpu7")) else 1


def _tuning(kind, itemsize):
    """Return (max_block_rows, vmem_limit_bytes) for this generation/dtype."""
    if "v7" in kind or "tpu7" in kind:
        base, vmem = 8192, 48 << 20      # 64 MiB physical VMEM on v7x — stay well under
    elif "v6" in kind:
        base, vmem = 8192, 64 << 20      # 128 MiB physical, 32 MiB default scoped
    elif "v5 lite" in kind or "v5e" in kind or "v5lite" in kind:
        base, vmem = 4096, 32 << 20      # default scoped limit is only 16 MiB
    else:
        base, vmem = 2048, None          # conservative, fits default limits everywhere
    packing = max(1, 4 // max(1, itemsize))   # keep ~constant bytes per DMA step
    return base * packing, vmem


def _make_kernel(tiles_per_split, tiles_total, block_rows, last_rows, exact_split):
    """Build the accumulation kernel.  The resident output block holds:
         out[0] = sum((r-t)^2)            (all elements)
         out[1] = sum((r-t)^2 ; t != 0)
         out[2] = count(t != 0)
    """
    groups = block_rows // 8
    ragged = last_rows != block_rows

    def _accumulate(out_ref, r, t):
        d = r - t
        sq = d * d
        nzf = (t != 0.0).astype(jnp.float32)
        # Fold (block_rows, 128) -> (groups, 8, 128) and sum over the leading
        # axis: layout-preserving reshape + pure VPU adds (no cross-lane ops).
        out_ref[0] += sq.reshape(groups, 8, LANES).sum(axis=0)
        out_ref[1] += (sq * nzf).reshape(groups, 8, LANES).sum(axis=0)
        out_ref[2] += nzf.reshape(groups, 8, LANES).sum(axis=0)

    def kernel(recon_ref, target_ref, out_ref):
        c = pl.program_id(0)
        i = pl.program_id(1)
        ft = c * tiles_per_split + i          # flat tile index

        @pl.when(i == 0)
        def _():
            out_ref[...] = jnp.zeros(out_ref.shape, jnp.float32)

        r = recon_ref[...].astype(jnp.float32)
        t = target_ref[...].astype(jnp.float32)

        if (not ragged) and exact_split:
            # Every tile is full and owned exactly once: no guards needed.
            _accumulate(out_ref, r, t)
        else:
            is_last = ft == tiles_total - 1
            in_range = ft < tiles_total
            full = jnp.logical_and(in_range, jnp.logical_not(is_last)) if ragged else in_range

            @pl.when(full)
            def _():
                _accumulate(out_ref, r, t)

            if ragged:
                @pl.when(is_last)
                def _():
                    rowid = lax.broadcasted_iota(jnp.int32, (block_rows, LANES), 0)
                    m = rowid < last_rows
                    # Select (not multiply) so OOB garbage (possibly NaN/Inf)
                    # never reaches the accumulators.
                    _accumulate(out_ref, jnp.where(m, r, 0.0), jnp.where(m, t, 0.0))

    return kernel


@jax.jit
def acb_loss(reconstructed_image, target_image,
             zero_weighting=1.0, nonzero_weighting=1.0):
    assert reconstructed_image.shape == target_image.shape
    n = int(reconstructed_image.size)
    itemsize = jnp.dtype(reconstructed_image.dtype).itemsize

    kind = _device_kind()
    num_tc = _num_tensorcores(kind)
    max_block_rows, vmem_limit = _tuning(kind, itemsize)
    row_align = 8 * max(1, 4 // max(1, itemsize))   # packed-sublane alignment

    # Lane-dense layout: rows of 128 lanes.  Free contiguous reshape when
    # n % 128 == 0 (no HBM copy); ragged row counts are masked in-kernel.
    def prep(x):
        flat = x.reshape(-1)
        if n % LANES != 0:
            # TODO(synk): lane-ragged sizes still take one small pad copy; a
            # 1-D block layout would remove it, but 2-D is kept for layout safety.
            flat = jnp.pad(flat, (0, _round_up(n, LANES) - n))
        return flat.reshape(-1, LANES)

    r2 = prep(reconstructed_image)
    t2 = prep(target_image)
    rows = r2.shape[0]

    block_rows = min(max_block_rows, _round_up(rows, row_align))
    block_rows = _round_up(block_rows, row_align)
    tiles_total = _cdiv(rows, block_rows)
    last_rows = rows - (tiles_total - 1) * block_rows   # rows in the last tile

    # Shard tiles across TensorCores only on 2-TC parts; split is done purely
    # in the index_map over the flat tile index (no physical reshape/pad).
    splits = num_tc if (num_tc > 1 and tiles_total >= num_tc) else 1
    tiles_per_split = _cdiv(tiles_total, splits)
    exact_split = splits * tiles_per_split == tiles_total

    kernel = _make_kernel(tiles_per_split, tiles_total, block_rows,
                          last_rows, exact_split)

    def in_map(c, i):
        ft = c * tiles_per_split + i
        # Clamp phantom tiles (only when splits doesn't divide tiles_total) so
        # their DMA stays in-bounds; the kernel skips their accumulation.
        return (jnp.minimum(ft, tiles_total - 1), 0)

    in_spec = pl.BlockSpec((block_rows, LANES), in_map)
    out_spec = pl.BlockSpec((None, 3, 8, LANES), lambda c, i: (c, 0, 0, 0))

    dims = ((pltpu.CORE_PARALLEL if splits > 1 else pltpu.PARALLEL),
            pltpu.ARBITRARY)

    partials = pl.pallas_call(
        kernel,
        out_shape=jax.ShapeDtypeStruct((splits, 3, 8, LANES), jnp.float32),
        grid_spec=pltpu.PrefetchScalarGridSpec(
            num_scalar_prefetch=0,
            grid=(splits, tiles_per_split),
            in_specs=[in_spec, in_spec],
            out_specs=out_spec,
        ),
        compiler_params=pltpu.CompilerParams(
            dimension_semantics=dims,
            vmem_limit_bytes=vmem_limit),
        cost_estimate=pl.CostEstimate(
            flops=8 * n,
            transcendentals=0,
            bytes_accessed=2 * n * itemsize + splits * 3 * 8 * LANES * 4),
    )(r2, t2)

    # Tiny epilogue reduction in plain JAX.
    sums = jnp.sum(partials, axis=(0, 2, 3))          # (3,)
    total_sq, nz_sq, nz_cnt = sums[0], sums[1], sums[2]
    zero_sq = jnp.maximum(total_sq - nz_sq, 0.0)
    # Zero pads / masked tails contribute 0 to every accumulator, so the true
    # zero-pixel count is recovered from the static element count.
    zero_cnt = jnp.float32(n) - nz_cnt

    # NaN guard: empty group -> MSE would be NaN -> PyTorch module uses 0.
    zero_loss = jnp.where(zero_cnt > 0.0, zero_sq / jnp.maximum(zero_cnt, 1.0), 0.0)
    nonzero_loss = jnp.where(nz_cnt > 0.0, nz_sq / jnp.maximum(nz_cnt, 1.0), 0.0)
    return zero_weighting * zero_loss + nonzero_weighting * nonzero_loss


def _reference(recon, target, zw=1.0, nzw=1.0):
    t = target.astype(jnp.float32)
    r = recon.astype(jnp.float32)
    sq = (r - t) ** 2
    zm = (t == 0.0)
    zc = jnp.sum(zm)
    nzc = jnp.sum(~zm)
    zl = jnp.where(zc > 0, jnp.sum(jnp.where(zm, sq, 0.0)) / jnp.maximum(zc, 1), 0.0)
    nzl = jnp.where(nzc > 0, jnp.sum(jnp.where(~zm, sq, 0.0)) / jnp.maximum(nzc, 1), 0.0)
    return zw * zl + nzw * nzl


if __name__ == "__main__":
    key = jax.random.PRNGKey(0)
    k1, k2 = jax.random.split(key)
    B, C, H, W = 2, 4, 16, 16
    u = jax.random.uniform(k1, (B, C, H, W), jnp.float32)
    # Sparsify target so it has exact zeros (as the module expects).
    target = jnp.where(u < 0.4, 0.0, u)
    recon = target + 0.1 * jax.random.normal(k2, (B, C, H, W), jnp.float32)

    loss = acb_loss(recon, target, zero_weighting=1.0, nonzero_weighting=1.0)
    loss = jax.block_until_ready(loss)

    ref = _reference(recon, target, 1.0, 1.0)
    assert jnp.allclose(loss, ref, rtol=1e-5, atol=1e-6), (loss, ref)
    print("KERNEL_OK")
</pallas_src>

<mosaic_0001>
module attributes {stable_mosaic.version = 11 : i64} {
  func.func @kernel(%arg0: i32, %arg1: i32, %arg2: memref<16x128xf32, #tpu.memory_space<vmem>>, %arg3: memref<16x128xf32, #tpu.memory_space<vmem>>, %arg4: memref<1x3x8x128xf32, #tpu.memory_space<vmem>>) attributes {dimension_semantics = [#tpu.dimension_semantics<parallel>, #tpu.dimension_semantics<arbitrary>], iteration_bounds = array<i64: 1, 1>, scalar_prefetch = 0 : i64, scratch_operands = 0 : i64, tpu.core_type = #tpu.core_type<tc>, window_params = [{transform_indices = @transform_0, window_bounds = array<i64: 16, 128>}, {transform_indices = @transform_1, window_bounds = array<i64: 16, 128>}, {transform_indices = @transform_2, window_bounds = array<i64: 1, 3, 8, 128>}]} {
    %c0_i32 = arith.constant 0 : i32
    %0 = arith.cmpi eq, %arg1, %c0_i32 : i32
    %1 = arith.extui %0 : i1 to i32
    %c0_i32_0 = arith.constant 0 : i32
    %2 = arith.cmpi ne, %1, %c0_i32_0 : i32
    scf.if %2 {
      %cst_29 = arith.constant 0.000000e+00 : f32
      %36 = vector.broadcast %cst_29 : f32 to vector<3x8x128xf32>
      %c0_30 = arith.constant 0 : index
      %c0_31 = arith.constant 0 : index
      %c0_32 = arith.constant 0 : index
      %c0_33 = arith.constant 0 : index
      %37 = vector.load %arg4[%c0_30, %c0_31, %c0_32, %c0_33] : memref<1x3x8x128xf32, #tpu.memory_space<vmem>>, vector<1x3x8x128xf32>
      %38 = vector.shape_cast %37 : vector<1x3x8x128xf32> to vector<3x8x128xf32>
      %39 = vector.shape_cast %36 : vector<3x8x128xf32> to vector<1x3x8x128xf32>
      tpu.vector_store %arg4[%c0_30, %c0_31, %c0_32, %c0_33], %39 {strides = array<i32>} : memref<1x3x8x128xf32, #tpu.memory_space<vmem>>, vector<1x3x8x128xf32>,
    } else {
    }
    %c0 = arith.constant 0 : index
    %c0_1 = arith.constant 0 : index
    %3 = vector.load %arg2[%c0, %c0_1] : memref<16x128xf32, #tpu.memory_space<vmem>>, vector<16x128xf32>
    %c0_2 = arith.constant 0 : index
    %c0_3 = arith.constant 0 : index
    %4 = vector.load %arg3[%c0_2, %c0_3] : memref<16x128xf32, #tpu.memory_space<vmem>>, vector<16x128xf32>
    %5 = arith.subf %3, %4 : vector<16x128xf32>
    %6 = arith.mulf %5, %5 : vector<16x128xf32>
    %cst = arith.constant 0.000000e+00 : f32
    %7 = vector.broadcast %cst : f32 to vector<16x128xf32>
    %8 = arith.cmpf one, %4, %7 : vector<16x128xf32>
    %9 = arith.extui %8 : vector<16x128xi1> to vector<16x128xi32>
    %10 = arith.sitofp %9 : vector<16x128xi32> to vector<16x128xf32>
    %c0_4 = arith.constant 0 : index
    %c0_5 = arith.constant 0 : index
    %c0_6 = arith.constant 0 : index
    %c0_7 = arith.constant 0 : index
    %11 = vector.load %arg4[%c0_4, %c0_5, %c0_6, %c0_7] : memref<1x3x8x128xf32, #tpu.memory_space<vmem>>, vector<1x1x8x128xf32>
    %12 = vector.shape_cast %11 : vector<1x1x8x128xf32> to vector<8x128xf32>
    %13 = vector.shape_cast %6 : vector<16x128xf32> to vector<2x8x128xf32>
    %cst_8 = arith.constant dense<0.000000e+00> : vector<8x128xf32>
    %14 = vector.multi_reduction <add>, %13, %cst_8 [0] : vector<2x8x128xf32> to vector<8x128xf32>
    %15 = arith.addf %12, %14 : vector<8x128xf32>
    %c0_9 = arith.constant 0 : index
    %c0_10 = arith.constant 0 : index
    %c0_11 = arith.constant 0 : index
    %c0_12 = arith.constant 0 : index
    %16 = vector.load %arg4[%c0_9, %c0_10, %c0_11, %c0_12] : memref<1x3x8x128xf32, #tpu.memory_space<vmem>>, vector<1x1x8x128xf32>
    %17 = vector.shape_cast %16 : vector<1x1x8x128xf32> to vector<8x128xf32>
    %18 = vector.shape_cast %15 : vector<8x128xf32> to vector<1x1x8x128xf32>
    tpu.vector_store %arg4[%c0_9, %c0_10, %c0_11, %c0_12], %18 {strides = array<i32>} : memref<1x3x8x128xf32, #tpu.memory_space<vmem>>, vector<1x1x8x128xf32>,
    %c0_13 = arith.constant 0 : index
    %c1 = arith.constant 1 : index
    %c0_14 = arith.constant 0 : index
    %c0_15 = arith.constant 0 : index
    %19 = vector.load %arg4[%c0_13, %c1, %c0_14, %c0_15] : memref<1x3x8x128xf32, #tpu.memory_space<vmem>>, vector<1x1x8x128xf32>
    %20 = vector.shape_cast %19 : vector<1x1x8x128xf32> to vector<8x128xf32>
    %21 = arith.mulf %6, %10 : vector<16x128xf32>
    %22 = vector.shape_cast %21 : vector<16x128xf32> to vector<2x8x128xf32>
    %cst_16 = arith.constant dense<0.000000e+00> : vector<8x128xf32>
    %23 = vector.multi_reduction <add>, %22, %cst_16 [0] : vector<2x8x128xf32> to vector<8x128xf32>
    %24 = arith.addf %20, %23 : vector<8x128xf32>
    %c0_17 = arith.constant 0 : index
    %c1_18 = arith.constant 1 : index
    %c0_19 = arith.constant 0 : index
    %c0_20 = arith.constant 0 : index
    %25 = vector.load %arg4[%c0_17, %c1_18, %c0_19, %c0_20] : memref<1x3x8x128xf32, #tpu.memory_space<vmem>>, vector<1x1x8x128xf32>
    %26 = vector.shape_cast %25 : vector<1x1x8x128xf32> to vector<8x128xf32>
    %27 = vector.shape_cast %24 : vector<8x128xf32> to vector<1x1x8x128xf32>
    tpu.vector_store %arg4[%c0_17, %c1_18, %c0_19, %c0_20], %27 {strides = array<i32>} : memref<1x3x8x128xf32, #tpu.memory_space<vmem>>, vector<1x1x8x128xf32>,
    %c0_21 = arith.constant 0 : index
    %c2 = arith.constant 2 : index
    %c0_22 = arith.constant 0 : index
    %c0_23 = arith.constant 0 : index
    %28 = vector.load %arg4[%c0_21, %c2, %c0_22, %c0_23] : memref<1x3x8x128xf32, #tpu.memory_space<vmem>>, vector<1x1x8x128xf32>
    %29 = vector.shape_cast %28 : vector<1x1x8x128xf32> to vector<8x128xf32>
    %30 = vector.shape_cast %10 : vector<16x128xf32> to vector<2x8x128xf32>
    %cst_24 = arith.constant dense<0.000000e+00> : vector<8x128xf32>
    %31 = vector.multi_reduction <add>, %30, %cst_24 [0] : vector<2x8x128xf32> to vector<8x128xf32>
    %32 = arith.addf %29, %31 : vector<8x128xf32>
    %c0_25 = arith.constant 0 : index
    %c2_26 = arith.constant 2 : index
    %c0_27 = arith.constant 0 : index
    %c0_28 = arith.constant 0 : index
    %33 = vector.load %arg4[%c0_25, %c2_26, %c0_27, %c0_28] : memref<1x3x8x128xf32, #tpu.memory_space<vmem>>, vector<1x1x8x128xf32>
    %34 = vector.shape_cast %33 : vector<1x1x8x128xf32> to vector<8x128xf32>
    %35 = vector.shape_cast %32 : vector<8x128xf32> to vector<1x1x8x128xf32>
    tpu.vector_store %arg4[%c0_25, %c2_26, %c0_27, %c0_28], %35 {strides = array<i32>} : memref<1x3x8x128xf32, #tpu.memory_space<vmem>>, vector<1x1x8x128xf32>,
    return
  }
  func.func @transform_0(%arg0: i32, %arg1: i32) -> (i32, i32) {
    %c1_i32 = arith.constant 1 : i32
    %0 = arith.muli %arg0, %c1_i32 : i32
    %1 = arith.addi %0, %arg1 : i32
    %c0_i32 = arith.constant 0 : i32
    %2 = arith.minsi %1, %c0_i32 : i32
    %c0_i32_0 = arith.constant 0 : i32
    %c0_i32_1 = arith.constant 0 : i32
    return %2, %c0_i32_0 : i32, i32
  }
  func.func @transform_1(%arg0: i32, %arg1: i32) -> (i32, i32) {
    %c1_i32 = arith.constant 1 : i32
    %0 = arith.muli %arg0, %c1_i32 : i32
    %1 = arith.addi %0, %arg1 : i32
    %c0_i32 = arith.constant 0 : i32
    %2 = arith.minsi %1, %c0_i32 : i32
    %c0_i32_0 = arith.constant 0 : i32
    %c0_i32_1 = arith.constant 0 : i32
    return %2, %c0_i32_0 : i32, i32
  }
  func.func @transform_2(%arg0: i32, %arg1: i32) -> (i32, i32, i32, i32) {
    %c0_i32 = arith.constant 0 : i32
    %c0_i32_0 = arith.constant 0 : i32
    %c0_i32_1 = arith.constant 0 : i32
    %c0_i32_2 = arith.constant 0 : i32
    return %arg0, %c0_i32, %c0_i32_0, %c0_i32_1 : i32, i32, i32, i32
  }
}

</mosaic_0001>

<llo_original>
// kernel: acb_loss.1
$region0: #{acb_loss.1}
  #allocation0 [shape = 'u32[]', space=smem, size = 0x4, offset = 0x4, fixed_abs, tag = 'smem constant byte address 0x4 - core index']
  #allocation1 [shape = 'u32[72,128]{1,0:T(1,128)}', space=vmem, size = 0x9000, scoped, tag = 'internal scratch']
  %s0 = inlined_call_operand.vmem [shape: f32[16,128], index: 0, kind: input, shape index: {}]
  %s1 = inlined_call_operand.vmem [shape: f32[16,128], index: 1, kind: input, shape index: {}]
  %s2 = inlined_call_operand.vmem [shape: f32[1,3,8,128], index: 2, kind: output, shape index: {}]
  %s3 = sld [smem:[#allocation0]]
  $region22: #{acb_loss.1} parent=0
    _
  %s5 = ssub.s32 1, %s3
  %s6 = scalar_select 0, %s5, %s3
  // Predicated region
  $region2: #{acb_loss.1} parent=0 // pred_check
    _
  $region3: #{acb_loss.1} parent=0 // pred_check_branch
    %8 = sbr.rel (0) target = $region5
  $region4: #{acb_loss.1} parent=0 // pred_region
    %s9 = sadd.s32 0, 0
    %p10 = scmp.lt.s32.totalorder %s9, 0
    %s11 = scalar_select %p10, %s9, 0
    %s12 = smul.u32 2, %s11
    %p13 = scmp.lt.s32.totalorder %s12, 1
    %s14 = scalar_select %p13, %s12, 1
    %s15 = smul.addr %s14, 8
    %s16 = scalar_lea.vmem %s0, %s15
    %s17 = sadd.s32 0, 0
    %p18 = scmp.lt.s32.totalorder %s17, 0
    %s19 = scalar_select %p18, %s17, 0
    %s20 = smul.u32 2, %s19
  $region5: #{acb_loss.1} parent=0 // pred_fallthru
    _
  // Predicated region
  $region6: #{acb_loss.1} parent=0 // pred_check
    _
  $region7: #{acb_loss.1} parent=0 // pred_check_branch
    %22 = sbr.rel (0) target = $region9
  $region8: #{acb_loss.1} parent=0 // pred_region
    %s23 = sadd.s32 0, 0
    %p24 = scmp.lt.s32.totalorder %s23, 0
    %s25 = scalar_select %p24, %s23, 0
    %s26 = smul.u32 2, %s25
    %p27 = scmp.lt.s32.totalorder %s26, 1
    %s28 = scalar_select %p27, %s26, 1
    %s29 = smul.addr %s28, 8
    %s30 = scalar_lea.vmem %s1, %s29
    %s31 = sadd.s32 0, 0
    %p32 = scmp.lt.s32.totalorder %s31, 0
    %s33 = scalar_select %p32, %s31, 0
    %s34 = smul.u32 2, %s33
  $region9: #{acb_loss.1} parent=0 // pred_fallthru
    _
  %s35 = sadd.s32 0, 0
  %p36 = scmp.lt.s32.totalorder %s35, 0
  %s37 = scalar_select %p36, %s35, 0
  %s38 = smul.u32 2, %s37
  %p39 = scmp.lt.s32.totalorder %s38, 1
  %s40 = scalar_select %p39, %s38, 1
  %s41 = smul.addr %s40, 8
  %s42 = scalar_lea.vmem %s0, %s41
  %s43 = sadd.s32 0, 0
  %p44 = scmp.lt.s32.totalorder %s43, 0
  %s45 = scalar_select %p44, %s43, 0
  %s46 = smul.u32 2, %s45
  %p47 = scmp.lt.s32.totalorder %s46, 1
  %s48 = scalar_select %p47, %s46, 1
  %s49 = smul.addr %s48, 8
  %s50 = scalar_lea.vmem %s1, %s49
  %s51 = sadd.s32 0, 0
  %p52 = scmp.lt.s32.totalorder %s51, 0
  %s53 = scalar_select %p52, %s51, 0
  %s54 = smul.u32 2, %s53
  %p55 = scmp.lt.s32.totalorder %s54, 1
  %s56 = scalar_select %p55, %s54, 1
  %s57 = smul.addr %s56, 8
  %s58 = scalar_lea.vmem %s0, %s57
  %s59 = sadd.s32 0, 0
  %p60 = scmp.lt.s32.totalorder %s59, 0
  %s61 = scalar_select %p60, %s59, 0
  %s62 = smul.u32 2, %s61
  %s63 = sadd.s32 0, 0
  %p64 = scmp.lt.s32.totalorder %s63, 0
  %s65 = scalar_select %p64, %s63, 0
  %s66 = smul.u32 2, %s65
  %p67 = scmp.lt.s32.totalorder %s66, 1
  %s68 = scalar_select %p67, %s66, 1
  %s69 = smul.addr %s68, 8
  %s70 = scalar_lea.vmem %s1, %s69
  %s71 = sadd.s32 0, 0
  %p72 = scmp.lt.s32.totalorder %s71, 0
  %s73 = scalar_select %p72, %s71, 0
  %s74 = smul.u32 2, %s73
  %p75 = scmp.eq.s32.totalorder 0, 0
  // Predicated region
  $region10: #{acb_loss.1} parent=0 // pred_check
    %p76 = pneg %p75
  $region11: #{acb_loss.1} parent=0 // pred_check_branch
    %78 = sbr.rel (%p76) target = $region13
  $region12: #{acb_loss.1} parent=0 // pred_region
    %79 = vst [vmem:[%s2] sm:$0xff] 0.0
    %80 = vst [vmem:[%s2 + $0x8] sm:$0xff] 0.0
    %81 = vst [vmem:[%s2 + $0x10] sm:$0xff] 0.0
  $region13: #{acb_loss.1} parent=0 // pred_fallthru
    _
  %v82 = vld [vmem:[%s58] sm:$0xff]
  %v83 = vld [vmem:[%s58 + $0x8] sm:$0xff]
  %v84 = vld [vmem:[%s70] sm:$0xff]
  %v85 = vld [vmem:[%s70 + $0x8] sm:$0xff]
  %v86 = vsub.f32 %v82, %v84
  %v87 = vsub.f32 %v83, %v85
  %v88 = vmul.f32 %v86, %v86
  %v89 = vmul.f32 %v87, %v87
  %vm90 = vcmp.ne.f32.partialorder %v84, 0.0
  %vm91 = vcmp.ne.f32.partialorder %v85, 0.0
  %v92 = vsel %vm90, 1, 0
  %v93 = vsel %vm91, 1, 0
  %v94 = vcvt.s32.f32 %v92
  %v95 = vcvt.s32.f32 %v93
  %v96 = vld [vmem:[%s2] sm:$0xff]
  %v97 = vadd.f32 %v88, %v89
  %v98 = vadd.f32 %v96, %v97
  %99 = vst [vmem:[%s2] sm:$0xff] %v98
  %s100 = scalar_lea.vmem %s2, 8
  %v101 = vld [vmem:[%s100] sm:$0xff]
  %v102 = vmul.f32 %v88, %v94
  %v103 = vmul.f32 %v89, %v95
  %v104 = vadd.f32 %v102, %v103
  %v105 = vadd.f32 %v101, %v104
  %106 = vst [vmem:[%s100] sm:$0xff] %v105
  %s107 = scalar_lea.vmem %s2, 16
  %v108 = vld [vmem:[%s107] sm:$0xff]
  %v109 = vadd.f32 %v94, %v95
  %v110 = vadd.f32 %v108, %v109
  %111 = vst [vmem:[%s107] sm:$0xff] %v110
  // Predicated region
  $region14: #{acb_loss.1} parent=0 // pred_check
    _
  $region15: #{acb_loss.1} parent=0 // pred_check_branch
    %113 = sbr.rel (0) target = $region17
  $region16: #{acb_loss.1} parent=0 // pred_region
    _
  $region17: #{acb_loss.1} parent=0 // pred_fallthru
    _
  // Predicated region
  $region18: #{acb_loss.1} parent=0 // pred_check
    _
  $region19: #{acb_loss.1} parent=0 // pred_check_branch
    %115 = sbr.rel (0) target = $region21
  $region20: #{acb_loss.1} parent=0 // pred_region
    _
  $region21: #{acb_loss.1} parent=0 // pred_fallthru
    _

</llo_original>
